<compile_context>
chip_gen: v7x
topology: tpu7x:2x2x1
jax: 0.10.0
libtpu: 0.0.40
codegen_flags: <defaults>
</compile_context>

<pallas_src>
import functools

import jax
import jax.numpy as jnp
from jax.experimental import pallas as pl
from jax.experimental.pallas import tpu as pltpu

H0 = 128      # feature extractor width (hidden_dims[0])
H1 = 64       # stream hidden width     (hidden_dims[1])
LANES = 128   # head lane width (out_dim <= 128)


def _round_up(n, m):
    return ((n + m - 1) // m) * m


def dueling_dqn_kernel(x_ref, w_ref, b_ref, q_ref, *, k_eff, out_dim):
    """One batch tile: 3 MXU matmuls; the dueling combine is folded into w2/b2."""
    cdt = w_ref.dtype                             # MXU operand dtype (bf16 or f32)

    x = x_ref[...].astype(cdt)                    # (TILE_B, k_eff)

    # Static slices of the packed slabs (zero runtime cost; offsets 8-aligned).
    wf = w_ref[0:k_eff, :]                        # (k_eff, 128)
    w1 = w_ref[k_eff:k_eff + H0, :]               # (128, 128)  [wv1 | wa1]
    w2 = w_ref[k_eff + H0:k_eff + 2 * H0, :]      # (128, 128)  folded dueling head
    bf = b_ref[0:1, :]
    b1 = b_ref[1:2, :]
    b2 = b_ref[2:3, :]

    # Feature extractor: Linear(in->128) + ReLU (f32 accumulate, f32 bias).
    f = jnp.maximum(jnp.dot(x, wf, preferred_element_type=jnp.float32) + bf, 0.0)

    # Fused value/advantage hidden layer: Linear(128->128) + ReLU.
    h = jnp.maximum(
        jnp.dot(f.astype(cdt), w1, preferred_element_type=jnp.float32) + b1, 0.0)

    # Folded head: lanes [0:out_dim) are Q = V + (A - mean(A)) directly.
    q = jnp.dot(h.astype(cdt), w2, preferred_element_type=jnp.float32) + b2
    q_ref[...] = q[:, :out_dim].astype(q_ref.dtype)


def pack_params(params, input_dim, output_dim, weight_dtype=jnp.bfloat16):
    """Pack the 10 Linear params into one weight slab and one (f32) bias slab.

    Weight slab rows: [0:k_eff)            Wf  (rows zero-padded to k_eff)
                      [k_eff:k_eff+128)    W1 = [wv1 | wa1]
                      [k_eff+128:k_eff+256) W2_fold (dueling combine folded in)
    Bias slab rows:   0 -> bf, 1 -> [bv1 | ba1], 2 -> folded head bias.
    """
    A = output_dim
    if A > LANES:
        raise ValueError(f"output_dim={A} must be <= {LANES} (one lane per action)")
    k_eff = _round_up(input_dim, 8)

    wf = jnp.zeros((k_eff, H0), jnp.float32).at[:input_dim, :].set(
        params["wf"].astype(jnp.float32))
    w1 = jnp.concatenate([params["wv1"], params["wa1"]], axis=1)            # (128,128)

    # Fold Q = V + (A - mean(A)) into the head weights/bias (algebraically exact).
    wa2c = params["wa2"] - jnp.mean(params["wa2"], axis=1, keepdims=True)   # (64, A)
    ba2c = params["ba2"] - jnp.mean(params["ba2"], axis=1, keepdims=True)   # (1, A)
    w2 = jnp.zeros((H0, LANES), jnp.float32)
    w2 = w2.at[:H1, :A].set(jnp.broadcast_to(params["wv2"], (H1, A)))       # V broadcast
    w2 = w2.at[H1:, :A].set(wa2c)                                           # centered A
    w_slab = jnp.concatenate([wf, w1, w2], axis=0).astype(weight_dtype)

    b_slab = jnp.zeros((8, LANES), jnp.float32)
    b_slab = b_slab.at[0, :].set(params["bf"][0])
    b_slab = b_slab.at[1, :H1].set(params["bv1"][0])
    b_slab = b_slab.at[1, H1:].set(params["ba1"][0])
    b_slab = b_slab.at[2, :A].set(params["bv2"][0, 0] + ba2c[0])
    return w_slab, b_slab


def _choose_tile_b(B):
    b8 = _round_up(max(B, 1), 8)
    if b8 <= 16:
        return b8
    # >= 2 grid steps so v7x megacore shards the batch over both TensorCores;
    # near-equal tiles capped at 2048 rows keep batch padding to < 8 rows/tile
    # while amortizing the ~0.35us/grid-step overhead. VMEM use stays ~1 MiB.
    n_tiles = max(2, pl.cdiv(b8, 2048))
    return _round_up(pl.cdiv(b8, n_tiles), 8)


def dueling_dqn_forward(x, packed, out_dim, *, tile_b=None):
    w_slab, b_slab = packed
    k_eff = w_slab.shape[0] - 2 * H0
    B, in_dim = x.shape
    assert in_dim <= k_eff, f"input_dim={in_dim} exceeds packed k_eff={k_eff}"
    assert out_dim <= LANES, f"output_dim={out_dim} must be <= {LANES}"

    if tile_b is None:
        tile_b = _choose_tile_b(B)
    b_pad = _round_up(B, tile_b)

    # Cast x to the MXU operand dtype (bf16 by default -> halves the x HBM
    # stream); pad only when strictly required (odd batch / odd feature dim).
    x_in = x.astype(w_slab.dtype)
    if b_pad != B or k_eff != in_dim:
        x_in = jnp.pad(x_in, ((0, b_pad - B), (0, k_eff - in_dim)))

    kernel = functools.partial(dueling_dqn_kernel, k_eff=k_eff, out_dim=out_dim)
    q_pad = pl.pallas_call(
        kernel,
        out_shape=jax.ShapeDtypeStruct((b_pad, out_dim), jnp.float32),
        grid_spec=pltpu.PrefetchScalarGridSpec(
            num_scalar_prefetch=0,
            grid=(b_pad // tile_b,),
            in_specs=[
                pl.BlockSpec((tile_b, k_eff), lambda i: (i, 0)),   # x: pipelined
                pl.BlockSpec(w_slab.shape, lambda i: (0, 0)),      # weights resident
                pl.BlockSpec(b_slab.shape, lambda i: (0, 0)),      # biases resident
            ],
            out_specs=pl.BlockSpec((tile_b, out_dim), lambda i: (i, 0)),
        ),
        compiler_params=pltpu.CompilerParams(
            dimension_semantics=("parallel",)),                    # v7x: both TCs
    )(x_in, w_slab, b_slab)

    # Padded batch rows (B..b_pad) hold bias-derived garbage; slice them away.
    return q_pad[:B] if b_pad != B else q_pad


def init_params(key, input_dim, output_dim, hidden_dims=(H0, H1)):
    """PyTorch-Linear-style init (uniform +/- 1/sqrt(fan_in)); weights stored (in,out)."""
    h0, h1 = hidden_dims

    def linear(k, fan_in, fan_out):
        kw, kb = jax.random.split(k)
        bound = 1.0 / jnp.sqrt(fan_in)
        w = jax.random.uniform(kw, (fan_in, fan_out), jnp.float32, -bound, bound)
        b = jax.random.uniform(kb, (1, fan_out), jnp.float32, -bound, bound)
        return w, b

    keys = jax.random.split(key, 5)
    wf, bf = linear(keys[0], input_dim, h0)
    wv1, bv1 = linear(keys[1], h0, h1)
    wv2, bv2 = linear(keys[2], h1, 1)
    wa1, ba1 = linear(keys[3], h0, h1)
    wa2, ba2 = linear(keys[4], h1, output_dim)
    return dict(wf=wf, bf=bf, wv1=wv1, bv1=bv1, wv2=wv2, bv2=bv2,
                wa1=wa1, ba1=ba1, wa2=wa2, ba2=ba2)


def reference_forward(x, p):
    f = jnp.maximum(x @ p["wf"] + p["bf"], 0.0)
    v = jnp.maximum(f @ p["wv1"] + p["bv1"], 0.0) @ p["wv2"] + p["bv2"]
    a = jnp.maximum(f @ p["wa1"] + p["ba1"], 0.0) @ p["wa2"] + p["ba2"]
    return v + (a - jnp.mean(a, axis=1, keepdims=True))


if __name__ == "__main__":
    key = jax.random.PRNGKey(0)
    k_x, k_p = jax.random.split(key)

    batch, input_dim, output_dim = 8, 32, 8
    x = jax.random.normal(k_x, (batch, input_dim), jnp.float32)
    params = init_params(k_p, input_dim, output_dim)
    q_ref = reference_forward(x, params)

    # Exact-path check: f32 weight slab, f32 x stream.
    packed_f32 = pack_params(params, input_dim, output_dim, weight_dtype=jnp.float32)
    q_f32 = jax.block_until_ready(dueling_dqn_forward(x, packed_f32, output_dim))
    assert q_f32.shape == (batch, output_dim)
    assert jnp.allclose(q_f32, q_ref, atol=1e-4, rtol=1e-4), "f32 mismatch vs JAX reference"

    # Default fast path: bf16 weights + bf16 x stream, f32 accumulation/epilogue.
    # NOTE: intermediate activations are also cast to bf16 between layers.
    packed_bf16 = pack_params(params, input_dim, output_dim)  # bf16 default
    q_bf16 = jax.block_until_ready(dueling_dqn_forward(x, packed_bf16, output_dim))
    assert q_bf16.shape == (batch, output_dim)
    assert jnp.allclose(q_bf16, q_ref, atol=1e-1, rtol=1e-1), "bf16 mismatch vs JAX reference"

    # TODO(synk): optional fp8(e4m3) operand path for v7x (gate on pltpu.get_tpu_info()).
    print("KERNEL_OK")
</pallas_src>

<mosaic_0001>
module attributes {stable_mosaic.version = 11 : i64} {
  func.func @dueling_dqn_kernel(%arg0: i32, %arg1: memref<8x32xf32, #tpu.memory_space<vmem>>, %arg2: memref<288x128xf32, #tpu.memory_space<vmem>>, %arg3: memref<8x128xf32, #tpu.memory_space<vmem>>, %arg4: memref<8x8xf32, #tpu.memory_space<vmem>>) attributes {dimension_semantics = [#tpu.dimension_semantics<parallel>], iteration_bounds = array<i64: 1>, scalar_prefetch = 0 : i64, scratch_operands = 0 : i64, tpu.core_type = #tpu.core_type<tc>, window_params = [{transform_indices = @transform_0, window_bounds = array<i64: 8, 32>}, {pipeline_mode = #tpu.pipeline_mode<synchronous>, transform_indices = @transform_1, window_bounds = array<i64: 288, 128>}, {pipeline_mode = #tpu.pipeline_mode<synchronous>, transform_indices = @transform_2, window_bounds = array<i64: 8, 128>}, {transform_indices = @transform_3, window_bounds = array<i64: 8, 8>}]} {
    %c0 = arith.constant 0 : index
    %c0_0 = arith.constant 0 : index
    %0 = vector.load %arg1[%c0, %c0_0] : memref<8x32xf32, #tpu.memory_space<vmem>>, vector<8x32xf32>
    %c0_1 = arith.constant 0 : index
    %c0_2 = arith.constant 0 : index
    %1 = vector.load %arg2[%c0_1, %c0_2] : memref<288x128xf32, #tpu.memory_space<vmem>>, vector<32x128xf32>
    %c32 = arith.constant 32 : index
    %c0_3 = arith.constant 0 : index
    %2 = vector.load %arg2[%c32, %c0_3] : memref<288x128xf32, #tpu.memory_space<vmem>>, vector<128x128xf32>
    %c160 = arith.constant 160 : index
    %c0_4 = arith.constant 0 : index
    %3 = vector.load %arg2[%c160, %c0_4] : memref<288x128xf32, #tpu.memory_space<vmem>>, vector<128x128xf32>
    %c0_5 = arith.constant 0 : index
    %c0_6 = arith.constant 0 : index
    %4 = vector.load %arg3[%c0_5, %c0_6] : memref<8x128xf32, #tpu.memory_space<vmem>>, vector<1x128xf32>
    %c1 = arith.constant 1 : index
    %c0_7 = arith.constant 0 : index
    %5 = vector.load %arg3[%c1, %c0_7] : memref<8x128xf32, #tpu.memory_space<vmem>>, vector<1x128xf32>
    %c2 = arith.constant 2 : index
    %c0_8 = arith.constant 0 : index
    %6 = vector.load %arg3[%c2, %c0_8] : memref<8x128xf32, #tpu.memory_space<vmem>>, vector<1x128xf32>
    %cst = arith.constant dense<0.000000e+00> : vector<8x128xf32>
    %7 = tpu.matmul %0, %1, %cst {dimension_numbers = #tpu.dot_dimension_numbers<[1], [0], [0], [1], [0, 0, 1, 1], [], []>} : vector<8x32xf32>, vector<32x128xf32>, vector<8x128xf32> -> vector<8x128xf32>
    %8 = vector.broadcast %4 : vector<1x128xf32> to vector<8x128xf32>
    %9 = arith.addf %7, %8 : vector<8x128xf32>
    %cst_9 = arith.constant 0.000000e+00 : f32
    %10 = vector.broadcast %cst_9 : f32 to vector<8x128xf32>
    %11 = arith.maximumf %9, %10 : vector<8x128xf32>
    %cst_10 = arith.constant dense<0.000000e+00> : vector<8x128xf32>
    %12 = tpu.matmul %11, %2, %cst_10 {dimension_numbers = #tpu.dot_dimension_numbers<[1], [0], [0], [1], [0, 0, 1, 1], [], []>} : vector<8x128xf32>, vector<128x128xf32>, vector<8x128xf32> -> vector<8x128xf32>
    %13 = vector.broadcast %5 : vector<1x128xf32> to vector<8x128xf32>
    %14 = arith.addf %12, %13 : vector<8x128xf32>
    %cst_11 = arith.constant 0.000000e+00 : f32
    %15 = vector.broadcast %cst_11 : f32 to vector<8x128xf32>
    %16 = arith.maximumf %14, %15 : vector<8x128xf32>
    %cst_12 = arith.constant dense<0.000000e+00> : vector<8x128xf32>
    %17 = tpu.matmul %16, %3, %cst_12 {dimension_numbers = #tpu.dot_dimension_numbers<[1], [0], [0], [1], [0, 0, 1, 1], [], []>} : vector<8x128xf32>, vector<128x128xf32>, vector<8x128xf32> -> vector<8x128xf32>
    %18 = vector.broadcast %6 : vector<1x128xf32> to vector<8x128xf32>
    %19 = arith.addf %17, %18 : vector<8x128xf32>
    %20 = vector.extract_strided_slice %19 {offsets = [0, 0], sizes = [8, 8], strides = [1, 1]} : vector<8x128xf32> to vector<8x8xf32>
    %c0_13 = arith.constant 0 : index
    %c0_14 = arith.constant 0 : index
    %21 = vector.load %arg4[%c0_13, %c0_14] : memref<8x8xf32, #tpu.memory_space<vmem>>, vector<8x8xf32>
    tpu.vector_store %arg4[%c0_13, %c0_14], %20 {strides = array<i32>} : memref<8x8xf32, #tpu.memory_space<vmem>>, vector<8x8xf32>,
    return
  }
  func.func @transform_0(%arg0: i32) -> (i32, i32) {
    %c0_i32 = arith.constant 0 : i32
    %c0_i32_0 = arith.constant 0 : i32
    return %arg0, %c0_i32 : i32, i32
  }
  func.func @transform_1(%arg0: i32) -> (i32, i32) {
    %c0_i32 = arith.constant 0 : i32
    %c0_i32_0 = arith.constant 0 : i32
    %c0_i32_1 = arith.constant 0 : i32
    return %c0_i32, %c0_i32_0 : i32, i32
  }
  func.func @transform_2(%arg0: i32) -> (i32, i32) {
    %c0_i32 = arith.constant 0 : i32
    %c0_i32_0 = arith.constant 0 : i32
    %c0_i32_1 = arith.constant 0 : i32
    return %c0_i32, %c0_i32_0 : i32, i32
  }
  func.func @transform_3(%arg0: i32) -> (i32, i32) {
    %c0_i32 = arith.constant 0 : i32
    %c0_i32_0 = arith.constant 0 : i32
    return %arg0, %c0_i32 : i32, i32
  }
}

</mosaic_0001>

<llo_original>
// kernel: tpu_custom_call.1
$region0: #{tpu_custom_call.1}
  #allocation0 [shape = 'u32[]', space=smem, size = 0x4, offset = 0x4, fixed_abs, tag = 'smem constant byte address 0x4 - core index']
  #allocation1 [shape = 'u32[144,128]{1,0:T(1,128)}', space=vmem, size = 0x12000, scoped, tag = 'internal scratch']
  %s0 = inlined_call_operand.hbm [shape: f32[8,32], index: 0, kind: input, shape index: {}]
  %s1 = inlined_call_operand.hbm [shape: f32[288,128], index: 1, kind: input, shape index: {}]
  %s2 = inlined_call_operand.hbm [shape: f32[8,128], index: 2, kind: input, shape index: {}]
  %s3 = inlined_call_operand.hbm [shape: f32[8,8], index: 3, kind: output, shape index: {}]
  %s4 = sld [smem:[#allocation0]]
  $region34: #{tpu_custom_call.1} parent=0
    _
  %s6 = ssub.s32 1, %s4
  %s7 = scalar_select 0, %s6, %s4
  $region1: #{tpu_custom_call.1} parent=0
    #allocation2 [shape = 'u8[4096]{0}', space=vmem, size = 0x1000, scoped, tag = 'input window, operand 0, single buffered']
    #allocation3 [shape = 's32[1]{0}', space=sflag, size = 0x4, scoped, tag = 'scoped memory for tpu_custom_call.1']
    #allocation4 [shape = 's32[1]{0}', space=sflag, size = 0x4, scoped, tag = 'scoped memory for tpu_custom_call.1']
    #allocation5 [shape = 'u8[147456]{0}', space=vmem, size = 0x24000, scoped, tag = 'input window, operand 1, single buffered']
    #allocation6 [shape = 's32[1]{0}', space=sflag, size = 0x4, scoped, tag = 'scoped memory for tpu_custom_call.1']
    #allocation7 [shape = 'u8[4096]{0}', space=vmem, size = 0x1000, scoped, tag = 'input window, operand 2, single buffered']
    #allocation8 [shape = 'u8[4096]{0}', space=vmem, size = 0x1000, scoped, tag = 'output window, operand 0, single buffered']
    %8 = vsyncpa [#allocation3], 0
    %9 = vsyncpa [#allocation6], 0
    %10 = vsyncpa [#allocation4], 0
    // Predicated region
    $region2: #{tpu_custom_call.1} parent=1 // pred_check
      _
    $region3: #{tpu_custom_call.1} parent=1 // pred_check_branch
      %12 = sbr.rel (0) target = $region5
    $region4: #{tpu_custom_call.1} parent=1 // pred_region
      %s14 = ssub.s32 128, 128
      %15 = vsyncadd [#allocation3], %s14
      %s17 = sshll.u32 [#allocation2], 4
      %s18 = int_to_ptr.vmem [resolvable:$true] %s17
      %20 = dma.hbm_to_vmem [thread:$0]  %s0, 128, %s18, [#allocation3]
    $region5: #{tpu_custom_call.1} parent=1 // pred_fallthru
      _
    // Predicated region
    $region6: #{tpu_custom_call.1} parent=1 // pred_check
      _
    $region7: #{tpu_custom_call.1} parent=1 // pred_check_branch
      %22 = sbr.rel (0) target = $region9
    $region8: #{tpu_custom_call.1} parent=1 // pred_region
      %s24 = ssub.s32 4608, 4608
      %25 = vsyncadd [#allocation6], %s24
      %s26 = sshll.u32 [#allocation5], 4
      %s27 = int_to_ptr.vmem [resolvable:$true] %s26
      %32 = dma.hbm_to_vmem [thread:$0]  %s1, 4608, %s27, [#allocation6], 128, 128, 8
    $region9: #{tpu_custom_call.1} parent=1 // pred_fallthru
      _
    // Predicated region
    $region10: #{tpu_custom_call.1} parent=1 // pred_check
      _
    $region11: #{tpu_custom_call.1} parent=1 // pred_check_branch
      %34 = sbr.rel (0) target = $region13
    $region12: #{tpu_custom_call.1} parent=1 // pred_region
      %s36 = ssub.s32 128, 128
      %37 = vsyncadd [#allocation6], %s36
      %s39 = sshll.u32 [#allocation7], 4
      %s40 = int_to_ptr.vmem [resolvable:$true] %s39
      %42 = dma.hbm_to_vmem [thread:$0]  %s2, 128, %s40, [#allocation6]
    $region13: #{tpu_custom_call.1} parent=1 // pred_fallthru
      _
    // Predicated region
    $region14: #{tpu_custom_call.1} parent=1 // pred_check
      _
    $region15: #{tpu_custom_call.1} parent=1 // pred_check_branch
      %44 = sbr.rel (0) target = $region17
    $region16: #{tpu_custom_call.1} parent=1 // pred_region
      %45 = dma.done [#allocation3], 128
    $region17: #{tpu_custom_call.1} parent=1 // pred_fallthru
      _
    // Predicated region
    $region18: #{tpu_custom_call.1} parent=1 // pred_check
      _
    $region19: #{tpu_custom_call.1} parent=1 // pred_check_branch
      %47 = sbr.rel (0) target = $region21
    $region20: #{tpu_custom_call.1} parent=1 // pred_region
      %48 = dma.done [#allocation6], 4608
    $region21: #{tpu_custom_call.1} parent=1 // pred_fallthru
      _
    // Predicated region
    $region22: #{tpu_custom_call.1} parent=1 // pred_check
      _
    $region23: #{tpu_custom_call.1} parent=1 // pred_check_branch
      %50 = sbr.rel (0) target = $region25
    $region24: #{tpu_custom_call.1} parent=1 // pred_region
      %51 = dma.done [#allocation6], 128
    $region25: #{tpu_custom_call.1} parent=1 // pred_fallthru
      _
    %v52 = vld [vmem:[#allocation2] sm:$0xff]
    %v53 = vld [vmem:[#allocation5] sm:$0xff]
    %v54 = vld [vmem:[#allocation5 + $0x8] sm:$0xff]
    %v55 = vld [vmem:[#allocation5 + $0x10] sm:$0xff]
    %v56 = vld [vmem:[#allocation5 + $0x18] sm:$0xff]
    %v57 = vld [vmem:[#allocation5 + $0x20] sm:$0xff]
    %v58 = vld [vmem:[#allocation5 + $0x28] sm:$0xff]
    %v59 = vld [vmem:[#allocation5 + $0x30] sm:$0xff]
    %v60 = vld [vmem:[#allocation5 + $0x38] sm:$0xff]
    %v61 = vld [vmem:[#allocation5 + $0x40] sm:$0xff]
    %v62 = vld [vmem:[#allocation5 + $0x48] sm:$0xff]
    %v63 = vld [vmem:[#allocation5 + $0x50] sm:$0xff]
    %v64 = vld [vmem:[#allocation5 + $0x58] sm:$0xff]
    %v65 = vld [vmem:[#allocation5 + $0x60] sm:$0xff]
    %v66 = vld [vmem:[#allocation5 + $0x68] sm:$0xff]
    %v67 = vld [vmem:[#allocation5 + $0x70] sm:$0xff]
    %v68 = vld [vmem:[#allocation5 + $0x78] sm:$0xff]
    %v69 = vld [vmem:[#allocation5 + $0x80] sm:$0xff]
    %v70 = vld [vmem:[#allocation5 + $0x88] sm:$0xff]
    %v71 = vld [vmem:[#allocation5 + $0x90] sm:$0xff]
    %v72 = vld [vmem:[#allocation5 + $0x98] sm:$0xff]
    %v73 = vld [vmem:[#allocation5 + $0xa0] sm:$0xff]
    %v74 = vld [vmem:[#allocation5 + $0xa8] sm:$0xff]
    %v75 = vld [vmem:[#allocation5 + $0xb0] sm:$0xff]
    %v76 = vld [vmem:[#allocation5 + $0xb8] sm:$0xff]
    %v77 = vld [vmem:[#allocation5 + $0xc0] sm:$0xff]
    %v78 = vld [vmem:[#allocation5 + $0xc8] sm:$0xff]
    %v79 = vld [vmem:[#allocation5 + $0xd0] sm:$0xff]
    %v80 = vld [vmem:[#allocation5 + $0xd8] sm:$0xff]
    %v81 = vld [vmem:[#allocation5 + $0xe0] sm:$0xff]
    %v82 = vld [vmem:[#allocation5 + $0xe8] sm:$0xff]
    %v83 = vld [vmem:[#allocation5 + $0xf0] sm:$0xff]
    %v84 = vld [vmem:[#allocation5 + $0xf8] sm:$0xff]
    %v85 = vld [vmem:[#allocation5 + $0x100] sm:$0xff]
    %v86 = vld [vmem:[#allocation5 + $0x108] sm:$0xff]
    %v87 = vld [vmem:[#allocation5 + $0x110] sm:$0xff]
    %v88 = vld [vmem:[#allocation5 + $0x118] sm:$0xff]
    %v89 = vld [vmem:[#allocation7] sm:$0x1]
    %v90 = vld [vmem:[#allocation7 + $0x1] sm:$0x1]
    %v91 = vld [vmem:[#allocation7 + $0x2] sm:$0x1]
    %v92 = vlaneseq
    %v93 = vshrl.u32 %v92, 7
    %v94 = vsub.s32 0, %v93
    %v95 = vrot.slane %v89, %v94
    %vm96 = vcmask 261120
    %v98 = vsel %vm96, %v52, 0
    %100 = vmatprep.subr.mxu0 0.0
    %101 = vmatpush1.msra.mxu0 %v53
    %102 = vmatprep.subr.mxu0 0.0
    %103 = vmatpush1.msra.mxu0 %v54
    %104 = vmatprep.subr.mxu0 0.0
    %105 = vmatpush1.msra.mxu0 %v55
    %106 = vmatprep.subr.mxu0 0.0
    %107 = vmatpush1.msra.mxu0 %v56
    %108 = vmatprep.subr.mxu0 0.0
    %109 = vmatpush1.msra.mxu0 0.0
    %110 = vmatprep.subr.mxu0 0.0
    %111 = vmatpush1.msra.mxu0 0.0
    %112 = vmatprep.subr.mxu0 0.0
    %113 = vmatpush1.msra.mxu0 0.0
    %114 = vmatprep.subr.mxu0 0.0
    %115 = vmatpush1.msra.mxu0 0.0
    %116 = vmatprep.subr.mxu0 0.0
    %117 = vmatpush1.msra.mxu0 0.0
    %118 = vmatprep.subr.mxu0 0.0
    %119 = vmatpush1.msra.mxu0 0.0
    %120 = vmatprep.subr.mxu0 0.0
    %121 = vmatpush1.msra.mxu0 0.0
    %122 = vmatprep.subr.mxu0 0.0
    %123 = vmatpush1.msra.mxu0 0.0
    %124 = vmatprep.subr.mxu0 0.0
    %125 = vmatpush1.msra.mxu0 0.0
    %126 = vmatprep.subr.mxu0 0.0
    %127 = vmatpush1.msra.mxu0 0.0
    %128 = vmatprep.subr.mxu0 0.0
    %129 = vmatpush1.msra.mxu0 0.0
    %130 = vmatprep.subr.mxu0 0.0
    %131 = vmatpush1.msra.mxu0 0.0
    %132 = vmatprep.subr.mxu0 0.0
    %133 = vmatpush1.msra.mxu0 0.0
    %134 = vmatprep.subr.mxu0 0.0
    %135 = vmatpush1.msra.mxu0 0.0
    %136 = vmatprep.subr.mxu0 0.0
    %137 = vmatpush1.msra.mxu0 0.0
    %138 = vmatprep.subr.mxu0 0.0
    %139 = vmatpush1.msra.mxu0 0.0
    %140 = vmatprep.subr.mxu0 0.0
    %141 = vmatpush1.msra.mxu0 0.0
    %142 = vmatprep.subr.mxu0 0.0
    %143 = vmatpush1.msra.mxu0 0.0
    %144 = vmatprep.subr.mxu0 0.0
    %145 = vmatpush1.msra.mxu0 0.0
    %146 = vmatprep.subr.mxu0 0.0
    %147 = vmatpush1.msra.mxu0 0.0
    %148 = vmatprep.subr.mxu0 0.0
    %149 = vmatpush1.msra.mxu0 0.0
    %150 = vmatprep.subr.mxu0 0.0
    %151 = vmatpush1.msra.mxu0 0.0
    %152 = vmatprep.subr.mxu0 0.0
    %153 = vmatpush1.msra.mxu0 0.0
    %154 = vmatprep.subr.mxu0 0.0
    %155 = vmatpush1.msra.mxu0 0.0
    %156 = vmatprep.subr.mxu0 0.0
    %157 = vmatpush1.msra.mxu0 0.0
    %158 = vmatprep.subr.mxu0 0.0
    %159 = vmatpush1.msra.mxu0 0.0
    %160 = vmatprep.subr.mxu0 0.0
    %161 = vmatpush1.msra.mxu0 0.0
    %162 = vmatprep.subr.mxu0 0.0
    %163 = vmatpush1.msra.mxu0 0.0
    %164 = vmatprep.mubr.f32.mxu0 0.0
    %165 = vmatmul.mubr.f32.gmra.mrb[0].mxu0 %v98
    %v166 = vpop.f32.mrb[0].mxu0
    %v167 = vadd.f32 %v95, %v166
    %v168 = vpop.f32.mrb[0].mxu0
    %169 = vdwg.mxu0
    %v170 = vmax.f32 %v167, 0.0
    %v171 = vlaneseq
    %v172 = vshrl.u32 %v171, 7
    %v173 = vsub.s32 0, %v172
    %v174 = vrot.slane %v90, %v173
    %175 = vmatprep.subr.mxu0 0.0
    %176 = vmatpush1.msra.mxu0 %v57
    %177 = vmatprep.subr.mxu0 0.0
    %178 = vmatpush1.msra.mxu0 %v58
    %179 = vmatprep.subr.mxu0 0.0
    %180 = vmatpush1.msra.mxu0 %v59
    %181 = vmatprep.subr.mxu0 0.0
    %182 = vmatpush1.msra.mxu0 %v60
    %183 = vmatprep.subr.mxu0 0.0
    %184 = vmatpush1.msra.mxu0 %v61
    %185 = vmatprep.subr.mxu0 0.0
    %186 = vmatpush1.msra.mxu0 %v62
    %187 = vmatprep.subr.mxu0 0.0
    %188 = vmatpush1.msra.mxu0 %v63
    %189 = vmatprep.subr.mxu0 0.0
    %190 = vmatpush1.msra.mxu0 %v64
    %191 = vmatprep.subr.mxu0 0.0
    %192 = vmatpush1.msra.mxu0 %v65
    %193 = vmatprep.subr.mxu0 0.0
    %194 = vmatpush1.msra.mxu0 %v66
    %195 = vmatprep.subr.mxu0 0.0
    %196 = vmatpush1.msra.mxu0 %v67
    %197 = vmatprep.subr.mxu0 0.0
    %198 = vmatpush1.msra.mxu0 %v68
    %199 = vmatprep.subr.mxu0 0.0
    %200 = vmatpush1.msra.mxu0 %v69
    %201 = vmatprep.subr.mxu0 0.0
    %202 = vmatpush1.msra.mxu0 %v70
    %203 = vmatprep.subr.mxu0 0.0
    %204 = vmatpush1.msra.mxu0 %v71
    %205 = vmatprep.subr.mxu0 0.0
    %206 = vmatpush1.msra.mxu0 %v72
    %207 = vmatprep.subr.mxu0 0.0
    %208 = vmatpush1.msra.mxu0 0.0
    %209 = vmatprep.subr.mxu0 0.0
    %210 = vmatpush1.msra.mxu0 0.0
    %211 = vmatprep.subr.mxu0 0.0
    %212 = vmatpush1.msra.mxu0 0.0
    %213 = vmatprep.subr.mxu0 0.0
    %214 = vmatpush1.msra.mxu0 0.0
    %215 = vmatprep.subr.mxu0 0.0
    %216 = vmatpush1.msra.mxu0 0.0
    %217 = vmatprep.subr.mxu0 0.0
    %218 = vmatpush1.msra.mxu0 0.0
    %219 = vmatprep.subr.mxu0 0.0
    %220 = vmatpush1.msra.mxu0 0.0
    %221 = vmatprep.subr.mxu0 0.0
    %222 = vmatpush1.msra.mxu0 0.0
    %223 = vmatprep.subr.mxu0 0.0
    %224 = vmatpush1.msra.mxu0 0.0
    %225 = vmatprep.subr.mxu0 0.0
    %226 = vmatpush1.msra.mxu0 0.0
    %227 = vmatprep.subr.mxu0 0.0
    %228 = vmatpush1.msra.mxu0 0.0
    %229 = vmatprep.subr.mxu0 0.0
    %230 = vmatpush1.msra.mxu0 0.0
    %231 = vmatprep.subr.mxu0 0.0
    %232 = vmatpush1.msra.mxu0 0.0
    %233 = vmatprep.subr.mxu0 0.0
    %234 = vmatpush1.msra.mxu0 0.0
    %235 = vmatprep.subr.mxu0 0.0
    %236 = vmatpush1.msra.mxu0 0.0
    %237 = vmatprep.subr.mxu0 0.0
    %238 = vmatpush1.msra.mxu0 0.0
    %239 = vmatprep.mubr.f32.mxu0 0.0
    %240 = vmatmul.mubr.f32.gmra.mrb[0].mxu0 %v170
    %v241 = vpop.f32.mrb[0].mxu0
    %v242 = vadd.f32 %v174, %v241
    %v243 = vpop.f32.mrb[0].mxu0
    %244 = vdwg.mxu0
    %v245 = vmax.f32 %v242, 0.0
    %v246 = vlaneseq
    %v247 = vshrl.u32 %v246, 7
    %v248 = vsub.s32 0, %v247
    %v249 = vrot.slane %v91, %v248
    %250 = vmatprep.subr.mxu0 0.0
    %251 = vmatpush1.msra.mxu0 %v73
    %252 = vmatprep.subr.mxu0 0.0
    %253 = vmatpush1.msra.mxu0 %v74
    %254 = vmatprep.subr.mxu0 0.0
    %255 = vmatpush1.msra.mxu0 %v75
    %256 = vmatprep.subr.mxu0 0.0
    %257 = vmatpush1.msra.mxu0 %v76
    %258 = vmatprep.subr.mxu0 0.0
    %259 = vmatpush1.msra.mxu0 %v77
    %260 = vmatprep.subr.mxu0 0.0
    %261 = vmatpush1.msra.mxu0 %v78
    %262 = vmatprep.subr.mxu0 0.0
    %263 = vmatpush1.msra.mxu0 %v79
    %264 = vmatprep.subr.mxu0 0.0
    %265 = vmatpush1.msra.mxu0 %v80
    %266 = vmatprep.subr.mxu0 0.0
    %267 = vmatpush1.msra.mxu0 %v81
    %268 = vmatprep.subr.mxu0 0.0
    %269 = vmatpush1.msra.mxu0 %v82
    %270 = vmatprep.subr.mxu0 0.0
    %271 = vmatpush1.msra.mxu0 %v83
    %272 = vmatprep.subr.mxu0 0.0
    %273 = vmatpush1.msra.mxu0 %v84
    %274 = vmatprep.subr.mxu0 0.0
    %275 = vmatpush1.msra.mxu0 %v85
    %276 = vmatprep.subr.mxu0 0.0
    %277 = vmatpush1.msra.mxu0 %v86
    %278 = vmatprep.subr.mxu0 0.0
    %279 = vmatpush1.msra.mxu0 %v87
    %280 = vmatprep.subr.mxu0 0.0
    %281 = vmatpush1.msra.mxu0 %v88
    %282 = vmatprep.subr.mxu0 0.0
    %283 = vmatpush1.msra.mxu0 0.0
    %284 = vmatprep.subr.mxu0 0.0
    %285 = vmatpush1.msra.mxu0 0.0
    %286 = vmatprep.subr.mxu0 0.0
    %287 = vmatpush1.msra.mxu0 0.0
    %288 = vmatprep.subr.mxu0 0.0
    %289 = vmatpush1.msra.mxu0 0.0
    %290 = vmatprep.subr.mxu0 0.0
    %291 = vmatpush1.msra.mxu0 0.0
    %292 = vmatprep.subr.mxu0 0.0
    %293 = vmatpush1.msra.mxu0 0.0
    %294 = vmatprep.subr.mxu0 0.0
    %295 = vmatpush1.msra.mxu0 0.0
    %296 = vmatprep.subr.mxu0 0.0
    %297 = vmatpush1.msra.mxu0 0.0
    %298 = vmatprep.subr.mxu0 0.0
    %299 = vmatpush1.msra.mxu0 0.0
    %300 = vmatprep.subr.mxu0 0.0
    %301 = vmatpush1.msra.mxu0 0.0
    %302 = vmatprep.subr.mxu0 0.0
    %303 = vmatpush1.msra.mxu0 0.0
    %304 = vmatprep.subr.mxu0 0.0
    %305 = vmatpush1.msra.mxu0 0.0
    %306 = vmatprep.subr.mxu0 0.0
    %307 = vmatpush1.msra.mxu0 0.0
    %308 = vmatprep.subr.mxu0 0.0
    %309 = vmatpush1.msra.mxu0 0.0
    %310 = vmatprep.subr.mxu0 0.0
    %311 = vmatpush1.msra.mxu0 0.0
    %312 = vmatprep.subr.mxu0 0.0
    %313 = vmatpush1.msra.mxu0 0.0
    %314 = vmatprep.mubr.f32.mxu0 0.0
    %315 = vmatmul.mubr.f32.gmra.mrb[0].mxu0 %v245
    %v316 = vpop.f32.mrb[0].mxu0
    %v317 = vadd.f32 %v249, %v316
    %v318 = vpop.f32.mrb[0].mxu0
    %319 = vdwg.mxu0
    %vm320 = vcmask 64512
    %321 = vst.msk [vmem:[#allocation8] sm:$0xff] %vm320, %v317
    // Predicated region
    $region26: #{tpu_custom_call.1} parent=1 // pred_check
      _
    $region27: #{tpu_custom_call.1} parent=1 // pred_check_branch
      %323 = sbr.rel (0) target = $region29
    $region28: #{tpu_custom_call.1} parent=1 // pred_region
      %s325 = ssub.s32 128, 128
      %326 = vsyncadd [#allocation4], %s325
      %s328 = sshll.u32 [#allocation8], 4
      %s329 = int_to_ptr.vmem [resolvable:$true] %s328
      %331 = dma.vmem_to_hbm [thread:$0]  %s329, 128, %s3, [#allocation4]
    $region29: #{tpu_custom_call.1} parent=1 // pred_fallthru
      _
    // Predicated region
    $region30: #{tpu_custom_call.1} parent=1 // pred_check
      _
    $region31: #{tpu_custom_call.1} parent=1 // pred_check_branch
      %333 = sbr.rel (0) target = $region33
    $region32: #{tpu_custom_call.1} parent=1 // pred_region
      %334 = dma.done [#allocation4], 128
    $region33: #{tpu_custom_call.1} parent=1 // pred_fallthru
      _
    %335 = vsyncpa [#allocation3], 1
    %336 = vsyncpa [#allocation6], 1
    %337 = vsyncpa [#allocation4], 1

</llo_original>
